<compile_context>
chip_gen: v6e
topology: v6e:2x2x1
jax: 0.10.0
libtpu: 0.0.40
codegen_flags: <defaults>
</compile_context>

<pallas_src>
import functools
import math

import numpy as np
import jax
import jax.numpy as jnp
from jax.experimental import pallas as pl
from jax.experimental.pallas import tpu as pltpu


# ----------------------------- Fused kernel ----------------------------------
def _lane_exist_kernel(x_ref, w1_ref, b1_ref, w2_ref, b2_ref, o_ref,
                       *, num_cls, hw):
    # x_ref : (B, C*H*W) f32   channel-major flattened input (lane-dense; channel c
    #                          occupies the lane block [c*HW, (c+1)*HW))
    # w1_ref: (C*H*W, 128) bf16   pooling already folded in     b1_ref: (1, 128) f32
    # w2_ref: (128, C-1)   bf16                                 b2_ref: (1, C-1) f32
    # o_ref : (B, C-1) f32
    x = x_ref[...]                                               # (B, C*HW) f32

    # ---- softmax over channels (per-channel slices, no duplicated broadcasts) ----
    parts = [x[:, c * hw:(c + 1) * hw] for c in range(num_cls)]  # each (B, HW)
    m = parts[0]
    for p in parts[1:]:
        m = jnp.maximum(m, p)                                    # channel max (VPU)
    es = [jnp.exp(p - m) for p in parts]                         # EUP
    d = es[0]
    for e in es[1:]:
        d = d + e                                                # channel sum
    inv = pl.reciprocal(d, approx=True)                          # EUP, ~free
    sm = jnp.concatenate([e * inv for e in es], axis=1)          # (B, C*HW) f32

    # ---- (AvgPool + flatten + Linear) fused: one bf16 MXU matmul, f32 acc ----
    h = jnp.dot(sm.astype(jnp.bfloat16), w1_ref[...],
                preferred_element_type=jnp.float32) + b1_ref[...]
    h = jnp.maximum(h, 0.0)                                      # ReLU (f32)

    # ---- Linear -> Sigmoid ----
    logits = jnp.dot(h.astype(jnp.bfloat16), w2_ref[...],
                     preferred_element_type=jnp.float32) + b2_ref[...]
    # NOTE: output has num_cls-1 = 3 lanes -> masked partial store; negligible here.
    o_ref[...] = jax.nn.sigmoid(logits).astype(o_ref.dtype)


# ----------------------------- Host-side parameter prep ----------------------
@functools.lru_cache(maxsize=None)
def _pool_gather_index(C, H, W, s):
    # Maps flattened input index r = c*H*W + h*W + w to the flattened pooled
    # index q = c*Hp*Wp + (h//s)*Wp + (w//s) -- exactly torch's
    # AvgPool2d(s,s) followed by x.view(-1, fc_input_feature) ordering.
    Hp, Wp = H // s, W // s
    r = np.arange(C * H * W)
    c = r // (H * W)
    rem = r % (H * W)
    h = rem // W
    w = rem % W
    return c * (Hp * Wp) + (h // s) * Wp + (w // s)


def prepare_params(params, C, H, W, avg_pool_stride):
    """Fold AvgPool2d into w1 and cast MXU weights to bf16 (done once, host-side)."""
    s = avg_pool_stride
    w1, b1, w2, b2 = params
    q = _pool_gather_index(C, H, W, s)
    w1_np = np.asarray(jax.device_get(w1), dtype=np.float32)       # (C*Hp*Wp, 128)
    w1_eff = w1_np[q] * (1.0 / float(s * s))                       # (C*H*W, 128)
    return (jnp.asarray(w1_eff, dtype=jnp.bfloat16),
            jnp.asarray(b1, dtype=jnp.float32),
            jnp.asarray(w2, dtype=jnp.bfloat16),
            jnp.asarray(b2, dtype=jnp.float32))


# ----------------------------- Wrapper ---------------------------------------
def lane_exist_forward(x, w1_eff, b1, w2, b2):
    B, C, H, W = x.shape
    HW = H * W
    hidden = w1_eff.shape[1]
    out_dim = w2.shape[1]

    # Contiguous reshape to the lane-dense (B, C*H*W) layout.
    # (Best perf when H*W is a multiple of 128, true for 16x16=256; slices stay
    #  correct otherwise, just lane-misaligned.)
    x2 = x.reshape(B, C * HW)

    flops = 2 * B * (C * HW) * hidden + 2 * B * hidden * out_dim
    bytes_accessed = (x2.size * 4 + w1_eff.size * 2 + b1.size * 4
                      + w2.size * 2 + b2.size * 4 + B * out_dim * 4)

    return pl.pallas_call(
        functools.partial(_lane_exist_kernel, num_cls=C, hw=HW),
        out_shape=jax.ShapeDtypeStruct((B, out_dim), x.dtype),
        in_specs=[pl.BlockSpec(memory_space=pltpu.MemorySpace.VMEM)] * 5,
        out_specs=pl.BlockSpec(memory_space=pltpu.MemorySpace.VMEM),
        cost_estimate=pl.CostEstimate(flops=flops,
                                      transcendentals=B * C * HW,
                                      bytes_accessed=bytes_accessed),
    )(x2, w1_eff, b1, w2, b2)


# ----------------------------- Deterministic parameter init ------------------
def init_params(key, fc_in, num_cls):
    # Mimics nn.Linear default init: U(-1/sqrt(fan_in), 1/sqrt(fan_in)).
    k1, k2, k3, k4 = jax.random.split(key, 4)
    b1_bound = 1.0 / math.sqrt(fc_in)
    b2_bound = 1.0 / math.sqrt(128)
    w1 = jax.random.uniform(k1, (fc_in, 128), jnp.float32, -b1_bound, b1_bound)
    b1 = jax.random.uniform(k2, (1, 128), jnp.float32, -b1_bound, b1_bound)
    w2 = jax.random.uniform(k3, (128, num_cls - 1), jnp.float32, -b2_bound, b2_bound)
    b2 = jax.random.uniform(k4, (1, num_cls - 1), jnp.float32, -b2_bound, b2_bound)
    return w1, b1, w2, b2


# ----------------------------- Pure-JAX f32 reference -------------------------
def reference(x, params, s):
    B, C, H, W = x.shape
    p = jax.nn.softmax(x, axis=1)
    pooled = p.reshape(B, C, H // s, s, W // s, s).mean(axis=(3, 5))
    xf = pooled.reshape(B, -1)
    w1, b1, w2, b2 = params
    h = jnp.maximum(xf @ w1 + b1, 0.0)
    return jax.nn.sigmoid(h @ w2 + b2)


if __name__ == "__main__":
    B, num_cls, ph, pw = 2, 4, 16, 16
    avg_pool_stride = 2
    fc_in = num_cls * (pw // avg_pool_stride) * (ph // avg_pool_stride)  # 256

    key = jax.random.PRNGKey(0)
    kx, kp = jax.random.split(key)
    x = jax.random.normal(kx, (B, num_cls, ph, pw), jnp.float32)
    params = init_params(kp, fc_in, num_cls)

    # One-time host-side weight prep (pool folded into w1, bf16 MXU weights).
    prepared = prepare_params(params, num_cls, ph, pw, avg_pool_stride)

    fwd = jax.jit(lane_exist_forward)
    out = jax.block_until_ready(fwd(x, *prepared))

    ref = reference(x, params, avg_pool_stride)   # full-f32 reference
    assert out.shape == (B, num_cls - 1), out.shape
    # bf16 MXU operands + approx reciprocal deviate from the f32 reference by
    # ~1e-4 at these magnitudes; 2e-3 leaves comfortable margin.
    assert jnp.allclose(out, ref, atol=2e-3, rtol=2e-3), (out, ref)
    print("KERNEL_OK")
</pallas_src>

<mosaic_0001>
module attributes {stable_mosaic.version = 11 : i64} {
  func.func @_lane_exist_kernel(%arg0: memref<2x1024xf32, #tpu.memory_space<vmem>>, %arg1: memref<1024x128xbf16, #tpu.memory_space<vmem>>, %arg2: memref<1x128xf32, #tpu.memory_space<vmem>>, %arg3: memref<128x3xbf16, #tpu.memory_space<vmem>>, %arg4: memref<1x3xf32, #tpu.memory_space<vmem>>, %arg5: memref<2x3xf32, #tpu.memory_space<vmem>>) attributes {dimension_semantics = [], scalar_prefetch = 0 : i64, scratch_operands = 0 : i64, tpu.core_type = #tpu.core_type<tc>} {
    %c0 = arith.constant 0 : index
    %c0_0 = arith.constant 0 : index
    %0 = vector.load %arg0[%c0, %c0_0] : memref<2x1024xf32, #tpu.memory_space<vmem>>, vector<2x1024xf32>
    %1 = vector.extract_strided_slice %0 {offsets = [0, 0], sizes = [2, 256], strides = [1, 1]} : vector<2x1024xf32> to vector<2x256xf32>
    %2 = vector.extract_strided_slice %0 {offsets = [0, 256], sizes = [2, 256], strides = [1, 1]} : vector<2x1024xf32> to vector<2x256xf32>
    %3 = vector.extract_strided_slice %0 {offsets = [0, 512], sizes = [2, 256], strides = [1, 1]} : vector<2x1024xf32> to vector<2x256xf32>
    %4 = vector.extract_strided_slice %0 {offsets = [0, 768], sizes = [2, 256], strides = [1, 1]} : vector<2x1024xf32> to vector<2x256xf32>
    %5 = arith.maximumf %1, %2 : vector<2x256xf32>
    %6 = arith.maximumf %5, %3 : vector<2x256xf32>
    %7 = arith.maximumf %6, %4 : vector<2x256xf32>
    %8 = arith.subf %1, %7 : vector<2x256xf32>
    %9 = math.exp %8 : vector<2x256xf32>
    %10 = arith.subf %2, %7 : vector<2x256xf32>
    %11 = math.exp %10 : vector<2x256xf32>
    %12 = arith.subf %3, %7 : vector<2x256xf32>
    %13 = math.exp %12 : vector<2x256xf32>
    %14 = arith.subf %4, %7 : vector<2x256xf32>
    %15 = math.exp %14 : vector<2x256xf32>
    %16 = arith.addf %9, %11 : vector<2x256xf32>
    %17 = arith.addf %16, %13 : vector<2x256xf32>
    %18 = arith.addf %17, %15 : vector<2x256xf32>
    %19 = tpu.reciprocal %18 {approx = true} : vector<2x256xf32> -> vector<2x256xf32>
    %20 = arith.mulf %9, %19 : vector<2x256xf32>
    %21 = arith.mulf %11, %19 : vector<2x256xf32>
    %22 = arith.mulf %13, %19 : vector<2x256xf32>
    %23 = arith.mulf %15, %19 : vector<2x256xf32>
    %24 = tpu.concatenate %20, %21, %22, %23 in 1 : vector<2x256xf32>, vector<2x256xf32>, vector<2x256xf32>, vector<2x256xf32> -> vector<2x1024xf32>
    %25 = arith.truncf %24 : vector<2x1024xf32> to vector<2x1024xbf16>
    %c0_1 = arith.constant 0 : index
    %c0_2 = arith.constant 0 : index
    %26 = vector.load %arg1[%c0_1, %c0_2] : memref<1024x128xbf16, #tpu.memory_space<vmem>>, vector<1024x128xbf16>
    %cst = arith.constant dense<0.000000e+00> : vector<2x128xf32>
    %27 = tpu.matmul %25, %26, %cst {dimension_numbers = #tpu.dot_dimension_numbers<[1], [0], [0], [1], [0, 0, 1, 1], [], []>} : vector<2x1024xbf16>, vector<1024x128xbf16>, vector<2x128xf32> -> vector<2x128xf32>
    %c0_3 = arith.constant 0 : index
    %c0_4 = arith.constant 0 : index
    %28 = vector.load %arg2[%c0_3, %c0_4] : memref<1x128xf32, #tpu.memory_space<vmem>>, vector<1x128xf32>
    %29 = vector.broadcast %28 : vector<1x128xf32> to vector<2x128xf32>
    %30 = arith.addf %27, %29 : vector<2x128xf32>
    %cst_5 = arith.constant 0.000000e+00 : f32
    %31 = vector.broadcast %cst_5 : f32 to vector<2x128xf32>
    %32 = arith.maximumf %30, %31 : vector<2x128xf32>
    %33 = arith.truncf %32 : vector<2x128xf32> to vector<2x128xbf16>
    %c0_6 = arith.constant 0 : index
    %c0_7 = arith.constant 0 : index
    %34 = vector.load %arg3[%c0_6, %c0_7] : memref<128x3xbf16, #tpu.memory_space<vmem>>, vector<128x3xbf16>
    %cst_8 = arith.constant dense<0.000000e+00> : vector<2x3xf32>
    %35 = tpu.matmul %33, %34, %cst_8 {dimension_numbers = #tpu.dot_dimension_numbers<[1], [0], [0], [1], [0, 0, 1, 1], [], []>} : vector<2x128xbf16>, vector<128x3xbf16>, vector<2x3xf32> -> vector<2x3xf32>
    %c0_9 = arith.constant 0 : index
    %c0_10 = arith.constant 0 : index
    %36 = vector.load %arg4[%c0_9, %c0_10] : memref<1x3xf32, #tpu.memory_space<vmem>>, vector<1x3xf32>
    %37 = vector.broadcast %36 : vector<1x3xf32> to vector<2x3xf32>
    %38 = arith.addf %35, %37 : vector<2x3xf32>
    %39 = arith.negf %38 : vector<2x3xf32>
    %40 = math.exp %39 : vector<2x3xf32>
    %cst_11 = arith.constant 1.000000e+00 : f32
    %41 = vector.broadcast %cst_11 : f32 to vector<2x3xf32>
    %42 = arith.addf %41, %40 : vector<2x3xf32>
    %43 = arith.divf %41, %42 : vector<2x3xf32>
    %c0_12 = arith.constant 0 : index
    %c0_13 = arith.constant 0 : index
    %44 = vector.load %arg5[%c0_12, %c0_13] : memref<2x3xf32, #tpu.memory_space<vmem>>, vector<2x3xf32>
    tpu.vector_store %arg5[%c0_12, %c0_13], %43 {strides = array<i32>} : memref<2x3xf32, #tpu.memory_space<vmem>>, vector<2x3xf32>,
    return
  }
}

</mosaic_0001>

<llo_original>
// kernel: lane_exist_forward.1
$region0: #{lane_exist_forward.1}
  #allocation0 [shape = 'u32[]', space=smem, size = 0x4, offset = 0x4, fixed_abs, tag = 'smem constant byte address 0x4 - core index']
  #allocation1 [shape = 'u32[144,128]{1,0:T(1,128)}', space=vmem, size = 0x12000, scoped, tag = 'internal scratch']
  %s0 = inlined_call_operand.vmem [shape: f32[2,1024], index: 0, kind: input, shape index: {}]
  %s1 = inlined_call_operand.hbm [shape: bf16[1024,128], index: 1, kind: input, shape index: {}]
  %s2 = inlined_call_operand.vmem [shape: f32[1,128], index: 2, kind: input, shape index: {}]
  %s3 = inlined_call_operand.vmem [shape: bf16[128,3], index: 3, kind: input, shape index: {}]
  %s4 = inlined_call_operand.vmem [shape: f32[1,3], index: 4, kind: input, shape index: {}]
  %s5 = inlined_call_operand.hbm [shape: f32[2,3], index: 5, kind: output, shape index: {}]
  %s6 = sld [smem:[#allocation0]]
  $region34: #{lane_exist_forward.1} parent=0
    _
  %s8 = ssub.s32 1, %s6
  %s9 = scalar_select 0, %s8, %s6
  $region1: #{lane_exist_forward.1} parent=0
    #allocation2 [shape = 'u8[262144]{0}', space=vmem, size = 0x40000, scoped, tag = 'input window, operand 1, single buffered']
    #allocation3 [shape = 's32[1]{0}', space=sflag, size = 0x4, scoped, tag = 'scoped memory for lane_exist_forward.1']
    #allocation4 [shape = 's32[1]{0}', space=sflag, size = 0x4, scoped, tag = 'scoped memory for lane_exist_forward.1']
    #allocation5 [shape = 'u8[1024]{0}', space=vmem, size = 0x400, scoped, tag = 'output window, operand 0, single buffered']
    %10 = vsyncpa [#allocation3], 0
    %11 = vsyncpa [#allocation4], 0
    // Predicated region
    $region2: #{lane_exist_forward.1} parent=1 // pred_check
      _
    $region3: #{lane_exist_forward.1} parent=1 // pred_check_branch
      %13 = sbr.rel (0) target = $region5
    $region4: #{lane_exist_forward.1} parent=1 // pred_region
      _
    $region5: #{lane_exist_forward.1} parent=1 // pred_fallthru
      _
    // Predicated region
    $region6: #{lane_exist_forward.1} parent=1 // pred_check
      _
    $region7: #{lane_exist_forward.1} parent=1 // pred_check_branch
      %15 = sbr.rel (0) target = $region9
    $region8: #{lane_exist_forward.1} parent=1 // pred_region
      %s17 = ssub.s32 8192, 8192
      %18 = vsyncadd [#allocation3], %s17
      %s19 = sshll.u32 [#allocation2], 4
      %s20 = int_to_ptr.vmem [resolvable:$true] %s19
      %25 = dma.hbm_to_vmem [thread:$0]  %s1, 8192, %s20, [#allocation3], 64, 64, 4
    $region9: #{lane_exist_forward.1} parent=1 // pred_fallthru
      _
    // Predicated region
    $region10: #{lane_exist_forward.1} parent=1 // pred_check
      _
    $region11: #{lane_exist_forward.1} parent=1 // pred_check_branch
      %27 = sbr.rel (0) target = $region13
    $region12: #{lane_exist_forward.1} parent=1 // pred_region
      _
    $region13: #{lane_exist_forward.1} parent=1 // pred_fallthru
      _
    // Predicated region
    $region14: #{lane_exist_forward.1} parent=1 // pred_check
      _
    $region15: #{lane_exist_forward.1} parent=1 // pred_check_branch
      %29 = sbr.rel (0) target = $region17
    $region16: #{lane_exist_forward.1} parent=1 // pred_region
      _
    $region17: #{lane_exist_forward.1} parent=1 // pred_fallthru
      _
    // Predicated region
    $region18: #{lane_exist_forward.1} parent=1 // pred_check
      _
    $region19: #{lane_exist_forward.1} parent=1 // pred_check_branch
      %31 = sbr.rel (0) target = $region21
    $region20: #{lane_exist_forward.1} parent=1 // pred_region
      _
    $region21: #{lane_exist_forward.1} parent=1 // pred_fallthru
      _
    // Predicated region
    $region22: #{lane_exist_forward.1} parent=1 // pred_check
      _
    $region23: #{lane_exist_forward.1} parent=1 // pred_check_branch
      %33 = sbr.rel (0) target = $region25
    $region24: #{lane_exist_forward.1} parent=1 // pred_region
      %34 = dma.done [#allocation3], 8192
    $region25: #{lane_exist_forward.1} parent=1 // pred_fallthru
      _
    %v36 = vld [vmem:[%s0] sm:$0xff]
    %v37 = vld [vmem:[%s0 + $0x8] sm:$0xff]
    %v39 = vrot.slane %v36, 4
    %v41 = vmax.f32 %v36, %v39
    %v42 = vmax.f32 %v41, %v37
    %v44 = vrot.slane %v37, 4
    %v46 = vmax.f32 %v42, %v44
    %v47 = vsub.f32 %v36, %v46
    %v48 = vmul.f32 %v47, 1.442695
    %v49 = vpow.pop %v48
    %v50 = vsub.f32 %v39, %v46
    %v51 = vmul.f32 %v50, 1.442695
    %v52 = vpow.pop %v51
    %v53 = vsub.f32 %v37, %v46
    %v54 = vmul.f32 %v53, 1.442695
    %v55 = vpow.pop %v54
    %v56 = vsub.f32 %v44, %v46
    %v57 = vmul.f32 %v56, 1.442695
    %v58 = vpow.pop %v57
    %v59 = vadd.f32 %v49, %v52
    %v60 = vadd.f32 %v59, %v55
    %v61 = vadd.f32 %v60, %v58
    %v62 = vrcp.pop %v61
    %v63 = vmul.f32 %v49, %v62
    %v64 = vmul.f32 %v52, %v62
    %v65 = vmul.f32 %v55, %v62
    %v66 = vmul.f32 %v58, %v62
    %v69 = vunpack.c.l.s4 1983009808
    %v70 = vunpack.c.0.s8 %v69
    %v71 = vlaneseq
    %v72 = vshrl.u32 %v71, 7
    %v73 = vsub.s32 %v70, %v72
    %v74 = vrot.slane %v63, %v73
    %v75 = vcombine.high %v74, %v74
    %v80 = vunpack.c.l.s4 1983009808
    %v81 = vunpack.c.0.s8 %v80
    %v82 = vlaneseq
    %v83 = vshrl.u32 %v82, 7
    %v84 = vsub.s32 %v81, %v83
    %v85 = vrot.slane %v64, %v84
    %v86 = vcombine.high %v85, %v85
    %v91 = vunpack.c.l.s4 1983009808
    %v92 = vunpack.c.0.s8 %v91
    %v93 = vlaneseq
    %v94 = vshrl.u32 %v93, 7
    %v95 = vsub.s32 %v92, %v94
    %v96 = vrot.slane %v65, %v95
    %v97 = vcombine.high %v96, %v96
    %v102 = vunpack.c.l.s4 1983009808
    %v103 = vunpack.c.0.s8 %v102
    %v104 = vlaneseq
    %v105 = vshrl.u32 %v104, 7
    %v106 = vsub.s32 %v103, %v105
    %v107 = vrot.slane %v66, %v106
    %v108 = vcombine.high %v107, %v107
    %v111 = vpack.c.bf16 %v74, %v74
    %v112 = vpack.c.bf16 %v75, %v75
    %v113 = vpack.c.bf16 %v85, %v85
    %v114 = vpack.c.bf16 %v86, %v86
    %v115 = vpack.c.bf16 %v96, %v96
    %v116 = vpack.c.bf16 %v97, %v97
    %v117 = vpack.c.bf16 %v107, %v107
    %v118 = vpack.c.bf16 %v108, %v108
    %v119 = vld [vmem:[#allocation2] sm:$0xf]
    %v120 = vld [vmem:[#allocation2 + $0x4] sm:$0xf]
    %v121 = vld [vmem:[#allocation2 + $0x8] sm:$0xf]
    %v122 = vld [vmem:[#allocation2 + $0xc] sm:$0xf]
    %v123 = vld [vmem:[#allocation2 + $0x10] sm:$0xf]
    %v124 = vld [vmem:[#allocation2 + $0x14] sm:$0xf]
    %v125 = vld [vmem:[#allocation2 + $0x18] sm:$0xf]
    %v126 = vld [vmem:[#allocation2 + $0x1c] sm:$0xf]
    %v127 = vld [vmem:[#allocation2 + $0x20] sm:$0xf]
    %v128 = vld [vmem:[#allocation2 + $0x24] sm:$0xf]
    %v129 = vld [vmem:[#allocation2 + $0x28] sm:$0xf]
    %v130 = vld [vmem:[#allocation2 + $0x2c] sm:$0xf]
    %v131 = vld [vmem:[#allocation2 + $0x30] sm:$0xf]
    %v132 = vld [vmem:[#allocation2 + $0x34] sm:$0xf]
    %v133 = vld [vmem:[#allocation2 + $0x38] sm:$0xf]
    %v134 = vld [vmem:[#allocation2 + $0x3c] sm:$0xf]
    %v135 = vld [vmem:[#allocation2 + $0x40] sm:$0xf]
    %v136 = vld [vmem:[#allocation2 + $0x44] sm:$0xf]
    %v137 = vld [vmem:[#allocation2 + $0x48] sm:$0xf]
    %v138 = vld [vmem:[#allocation2 + $0x4c] sm:$0xf]
    %v139 = vld [vmem:[#allocation2 + $0x50] sm:$0xf]
    %v140 = vld [vmem:[#allocation2 + $0x54] sm:$0xf]
    %v141 = vld [vmem:[#allocation2 + $0x58] sm:$0xf]
    %v142 = vld [vmem:[#allocation2 + $0x5c] sm:$0xf]
    %v143 = vld [vmem:[#allocation2 + $0x60] sm:$0xf]
    %v144 = vld [vmem:[#allocation2 + $0x64] sm:$0xf]
    %v145 = vld [vmem:[#allocation2 + $0x68] sm:$0xf]
    %v146 = vld [vmem:[#allocation2 + $0x6c] sm:$0xf]
    %v147 = vld [vmem:[#allocation2 + $0x70] sm:$0xf]
    %v148 = vld [vmem:[#allocation2 + $0x74] sm:$0xf]
    %v149 = vld [vmem:[#allocation2 + $0x78] sm:$0xf]
    %v150 = vld [vmem:[#allocation2 + $0x7c] sm:$0xf]
    %v151 = vld [vmem:[#allocation2 + $0x80] sm:$0xf]
    %v152 = vld [vmem:[#allocation2 + $0x84] sm:$0xf]
    %v153 = vld [vmem:[#allocation2 + $0x88] sm:$0xf]
    %v154 = vld [vmem:[#allocation2 + $0x8c] sm:$0xf]
    %v155 = vld [vmem:[#allocation2 + $0x90] sm:$0xf]
    %v156 = vld [vmem:[#allocation2 + $0x94] sm:$0xf]
    %v157 = vld [vmem:[#allocation2 + $0x98] sm:$0xf]
    %v158 = vld [vmem:[#allocation2 + $0x9c] sm:$0xf]
    %v159 = vld [vmem:[#allocation2 + $0xa0] sm:$0xf]
    %v160 = vld [vmem:[#allocation2 + $0xa4] sm:$0xf]
    %v161 = vld [vmem:[#allocation2 + $0xa8] sm:$0xf]
    %v162 = vld [vmem:[#allocation2 + $0xac] sm:$0xf]
    %v163 = vld [vmem:[#allocation2 + $0xb0] sm:$0xf]
    %v164 = vld [vmem:[#allocation2 + $0xb4] sm:$0xf]
    %v165 = vld [vmem:[#allocation2 + $0xb8] sm:$0xf]
    %v166 = vld [vmem:[#allocation2 + $0xbc] sm:$0xf]
    %v167 = vld [vmem:[#allocation2 + $0xc0] sm:$0xf]
    %v168 = vld [vmem:[#allocation2 + $0xc4] sm:$0xf]
    %v169 = vld [vmem:[#allocation2 + $0xc8] sm:$0xf]
    %v170 = vld [vmem:[#allocation2 + $0xcc] sm:$0xf]
    %v171 = vld [vmem:[#allocation2 + $0xd0] sm:$0xf]
    %v172 = vld [vmem:[#allocation2 + $0xd4] sm:$0xf]
    %v173 = vld [vmem:[#allocation2 + $0xd8] sm:$0xf]
    %v174 = vld [vmem:[#allocation2 + $0xdc] sm:$0xf]
    %v175 = vld [vmem:[#allocation2 + $0xe0] sm:$0xf]
    %v176 = vld [vmem:[#allocation2 + $0xe4] sm:$0xf]
    %v177 = vld [vmem:[#allocation2 + $0xe8] sm:$0xf]
    %v178 = vld [vmem:[#allocation2 + $0xec] sm:$0xf]
    %v179 = vld [vmem:[#allocation2 + $0xf0] sm:$0xf]
    %v180 = vld [vmem:[#allocation2 + $0xf4] sm:$0xf]
    %v181 = vld [vmem:[#allocation2 + $0xf8] sm:$0xf]
    %v182 = vld [vmem:[#allocation2 + $0xfc] sm:$0xf]
    %v183 = vld [vmem:[#allocation2 + $0x100] sm:$0xf]
    %v184 = vld [vmem:[#allocation2 + $0x104] sm:$0xf]
    %v185 = vld [vmem:[#allocation2 + $0x108] sm:$0xf]
    %v186 = vld [vmem:[#allocation2 + $0x10c] sm:$0xf]
    %v187 = vld [vmem:[#allocation2 + $0x110] sm:$0xf]
    %v188 = vld [vmem:[#allocation2 + $0x114] sm:$0xf]
    %v189 = vld [vmem:[#allocation2 + $0x118] sm:$0xf]
    %v190 = vld [vmem:[#allocation2 + $0x11c] sm:$0xf]
    %v191 = vld [vmem:[#allocation2 + $0x120] sm:$0xf]
    %v192 = vld [vmem:[#allocation2 + $0x124] sm:$0xf]
    %v193 = vld [vmem:[#allocation2 + $0x128] sm:$0xf]
    %v194 = vld [vmem:[#allocation2 + $0x12c] sm:$0xf]
    %v195 = vld [vmem:[#allocation2 + $0x130] sm:$0xf]
    %v196 = vld [vmem:[#allocation2 + $0x134] sm:$0xf]
    %v197 = vld [vmem:[#allocation2 + $0x138] sm:$0xf]
    %v198 = vld [vmem:[#allocation2 + $0x13c] sm:$0xf]
    %v199 = vld [vmem:[#allocation2 + $0x140] sm:$0xf]
    %v200 = vld [vmem:[#allocation2 + $0x144] sm:$0xf]
    %v201 = vld [vmem:[#allocation2 + $0x148] sm:$0xf]
    %v202 = vld [vmem:[#allocation2 + $0x14c] sm:$0xf]
    %v203 = vld [vmem:[#allocation2 + $0x150] sm:$0xf]
    %v204 = vld [vmem:[#allocation2 + $0x154] sm:$0xf]
    %v205 = vld [vmem:[#allocation2 + $0x158] sm:$0xf]
    %v206 = vld [vmem:[#allocation2 + $0x15c] sm:$0xf]
    %v207 = vld [vmem:[#allocation2 + $0x160] sm:$0xf]
    %v208 = vld [vmem:[#allocation2 + $0x164] sm:$0xf]
    %v209 = vld [vmem:[#allocation2 + $0x168] sm:$0xf]
    %v210 = vld [vmem:[#allocation2 + $0x16c] sm:$0xf]
    %v211 = vld [vmem:[#allocation2 + $0x170] sm:$0xf]
    %v212 = vld [vmem:[#allocation2 + $0x174] sm:$0xf]
    %v213 = vld [vmem:[#allocation2 + $0x178] sm:$0xf]
    %v214 = vld [vmem:[#allocation2 + $0x17c] sm:$0xf]
    %v215 = vld [vmem:[#allocation2 + $0x180] sm:$0xf]
    %v216 = vld [vmem:[#allocation2 + $0x184] sm:$0xf]
    %v217 = vld [vmem:[#allocation2 + $0x188] sm:$0xf]
    %v218 = vld [vmem:[#allocation2 + $0x18c] sm:$0xf]
    %v219 = vld [vmem:[#allocation2 + $0x190] sm:$0xf]
    %v220 = vld [vmem:[#allocation2 + $0x194] sm:$0xf]
    %v221 = vld [vmem:[#allocation2 + $0x198] sm:$0xf]
    %v222 = vld [vmem:[#allocation2 + $0x19c] sm:$0xf]
    %v223 = vld [vmem:[#allocation2 + $0x1a0] sm:$0xf]
    %v224 = vld [vmem:[#allocation2 + $0x1a4] sm:$0xf]
    %v225 = vld [vmem:[#allocation2 + $0x1a8] sm:$0xf]
    %v226 = vld [vmem:[#allocation2 + $0x1ac] sm:$0xf]
    %v227 = vld [vmem:[#allocation2 + $0x1b0] sm:$0xf]
    %v228 = vld [vmem:[#allocation2 + $0x1b4] sm:$0xf]
    %v229 = vld [vmem:[#allocation2 + $0x1b8] sm:$0xf]
    %v230 = vld [vmem:[#allocation2 + $0x1bc] sm:$0xf]
    %v231 = vld [vmem:[#allocation2 + $0x1c0] sm:$0xf]
    %v232 = vld [vmem:[#allocation2 + $0x1c4] sm:$0xf]
    %v233 = vld [vmem:[#allocation2 + $0x1c8] sm:$0xf]
    %v234 = vld [vmem:[#allocation2 + $0x1cc] sm:$0xf]
    %v235 = vld [vmem:[#allocation2 + $0x1d0] sm:$0xf]
    %v236 = vld [vmem:[#allocation2 + $0x1d4] sm:$0xf]
    %v237 = vld [vmem:[#allocation2 + $0x1d8] sm:$0xf]
    %v238 = vld [vmem:[#allocation2 + $0x1dc] sm:$0xf]
    %v239 = vld [vmem:[#allocation2 + $0x1e0] sm:$0xf]
    %v240 = vld [vmem:[#allocation2 + $0x1e4] sm:$0xf]
    %v241 = vld [vmem:[#allocation2 + $0x1e8] sm:$0xf]
    %v242 = vld [vmem:[#allocation2 + $0x1ec] sm:$0xf]
    %v243 = vld [vmem:[#allocation2 + $0x1f0] sm:$0xf]
    %v244 = vld [vmem:[#allocation2 + $0x1f4] sm:$0xf]
    %v245 = vld [vmem:[#allocation2 + $0x1f8] sm:$0xf]
    %v246 = vld [vmem:[#allocation2 + $0x1fc] sm:$0xf]
    %v247 = vld [vmem:[%s2] sm:$0x1]
    %v249 = vlaneseq
    %v250 = vshrl.u32 %v249, 7
    %v251 = vsub.s32 0, %v250
    %v252 = vrot.slane %v247, %v251
    %v382 = vunpack.c.l.b16 %v119
    %v383 = vunpack.c.l.b16 %v120
    %v384 = vunpack.c.l.b16 %v121
    %v385 = vunpack.c.l.b16 %v122
    %v386 = vunpack.c.l.b16 %v123
    %v387 = vunpack.c.l.b16 %v124
    %v388 = vunpack.c.l.b16 %v125
    %v389 = vunpack.c.l.b16 %v126
    %v390 = vunpack.c.l.b16 %v127
    %v391 = vunpack.c.l.b16 %v128
    %v392 = vunpack.c.l.b16 %v129
    %v393 = vunpack.c.l.b16 %v130
    %v394 = vunpack.c.l.b16 %v131
    %v395 = vunpack.c.l.b16 %v132
    %v396 = vunpack.c.l.b16 %v133
    %v397 = vunpack.c.l.b16 %v134
    %v398 = vunpack.c.l.b16 %v135
    %v399 = vunpack.c.l.b16 %v136
    %v400 = vunpack.c.l.b16 %v137
    %v401 = vunpack.c.l.b16 %v138
    %v402 = vunpack.c.l.b16 %v139
    %v403 = vunpack.c.l.b16 %v140
    %v404 = vunpack.c.l.b16 %v141
    %v405 = vunpack.c.l.b16 %v142
    %v406 = vunpack.c.l.b16 %v143
    %v407 = vunpack.c.l.b16 %v144
    %v408 = vunpack.c.l.b16 %v145
    %v409 = vunpack.c.l.b16 %v146
    %v410 = vunpack.c.l.b16 %v147
    %v411 = vunpack.c.l.b16 %v148
    %v412 = vunpack.c.l.b16 %v149
    %v413 = vunpack.c.l.b16 %v150
    %v414 = vunpack.c.l.b16 %v151
    %v415 = vunpack.c.l.b16 %v152
    %v416 = vunpack.c.l.b16 %v153
    %v417 = vunpack.c.l.b16 %v154
    %v418 = vunpack.c.l.b16 %v155
    %v419 = vunpack.c.l.b16 %v156
    %v420 = vunpack.c.l.b16 %v157
    %v421 = vunpack.c.l.b16 %v158
    %v422 = vunpack.c.l.b16 %v159
    %v423 = vunpack.c.l.b16 %v160
    %v424 = vunpack.c.l.b16 %v161
    %v425 = vunpack.c.l.b16 %v162
    %v426 = vunpack.c.l.b16 %v163
    %v427 = vunpack.c.l.b16 %v164
    %v428 = vunpack.c.l.b16 %v165
    %v429 = vunpack.c.l.b16 %v166
    %v430 = vunpack.c.l.b16 %v167
    %v431 = vunpack.c.l.b16 %v168
    %v432 = vunpack.c.l.b16 %v169
    %v433 = vunpack.c.l.b16 %v170
    %v434 = vunpack.c.l.b16 %v171
    %v435 = vunpack.c.l.b16 %v172
    %v436 = vunpack.c.l.b16 %v173
    %v437 = vunpack.c.l.b16 %v174
    %v438 = vunpack.c.l.b16 %v175
    %v439 = vunpack.c.l.b16 %v176
    %v440 = vunpack.c.l.b16 %v177
    %v441 = vunpack.c.l.b16 %v178
    %v442 = vunpack.c.l.b16 %v179
    %v443 = vunpack.c.l.b16 %v180
    %v444 = vunpack.c.l.b16 %v181
    %v445 = vunpack.c.l.b16 %v182
    %v446 = vunpack.c.l.b16 %v183
    %v447 = vunpack.c.l.b16 %v184
    %v448 = vunpack.c.l.b16 %v185
    %v449 = vunpack.c.l.b16 %v186
    %v450 = vunpack.c.l.b16 %v187
    %v451 = vunpack.c.l.b16 %v188
    %v452 = vunpack.c.l.b16 %v189
    %v453 = vunpack.c.l.b16 %v190
    %v454 = vunpack.c.l.b16 %v191
    %v455 = vunpack.c.l.b16 %v192
    %v456 = vunpack.c.l.b16 %v193
    %v457 = vunpack.c.l.b16 %v194
    %v458 = vunpack.c.l.b16 %v195
    %v459 = vunpack.c.l.b16 %v196
    %v460 = vunpack.c.l.b16 %v197
    %v461 = vunpack.c.l.b16 %v198
    %v462 = vunpack.c.l.b16 %v199
    %v463 = vunpack.c.l.b16 %v200
    %v464 = vunpack.c.l.b16 %v201
    %v465 = vunpack.c.l.b16 %v202
    %v466 = vunpack.c.l.b16 %v203
    %v467 = vunpack.c.l.b16 %v204
    %v468 = vunpack.c.l.b16 %v205
    %v469 = vunpack.c.l.b16 %v206
    %v470 = vunpack.c.l.b16 %v207
    %v471 = vunpack.c.l.b16 %v208
    %v472 = vunpack.c.l.b16 %v209
    %v473 = vunpack.c.l.b16 %v210
    %v474 = vunpack.c.l.b16 %v211
    %v475 = vunpack.c.l.b16 %v212
    %v476 = vunpack.c.l.b16 %v213
    %v477 = vunpack.c.l.b16 %v214
    %v478 = vunpack.c.l.b16 %v215
    %v479 = vunpack.c.l.b16 %v216
    %v480 = vunpack.c.l.b16 %v217
    %v481 = vunpack.c.l.b16 %v218
    %v482 = vunpack.c.l.b16 %v219
    %v483 = vunpack.c.l.b16 %v220
    %v484 = vunpack.c.l.b16 %v221
    %v485 = vunpack.c.l.b16 %v222
    %v486 = vunpack.c.l.b16 %v223
    %v487 = vunpack.c.l.b16 %v224
    %v488 = vunpack.c.l.b16 %v225
    %v489 = vunpack.c.l.b16 %v226
    %v490 = vunpack.c.l.b16 %v227
    %v491 = vunpack.c.l.b16 %v228
    %v492 = vunpack.c.l.b16 %v229
    %v493 = vunpack.c.l.b16 %v230
    %v494 = vunpack.c.l.b16 %v231
    %v495 = vunpack.c.l.b16 %v232
    %v496 = vunpack.c.l.b16 %v233
    %v497 = vunpack.c.l.b16 %v234
    %v498 = vunpack.c.l.b16 %v235
    %v499 = vunpack.c.l.b16 %v236
    %v500 = vunpack.c.l.b16 %v237
    %v501 = vunpack.c.l.b16 %v238
    %v502 = vunpack.c.l.b16 %v239
    %v503 = vunpack.c.l.b16 %v240
    %v504 = vunpack.c.l.b16 %v241
    %v505 = vunpack.c.l.b16 %v242
    %v506 = vunpack.c.l.b16 %v243
    %v507 = vunpack.c.l.b16 %v244
    %v508 = vunpack.c.l.b16 %v245
    %v509 = vunpack.c.l.b16 %v246
    %v510 = vpack.c.b16 %v383, %v382
    %v511 = vpack.c.b16 %v385, %v384
    %v512 = vpack.c.b16 %v387, %v386
    %v513 = vpack.c.b16 %v389, %v388
    %v514 = vpack.c.b16 %v391, %v390
    %v515 = vpack.c.b16 %v393, %v392
    %v516 = vpack.c.b16 %v395, %v394
    %v517 = vpack.c.b16 %v397, %v396
    %v518 = vpack.c.b16 %v399, %v398
    %v519 = vpack.c.b16 %v401, %v400
    %v520 = vpack.c.b16 %v403, %v402
    %v521 = vpack.c.b16 %v405, %v404
    %v522 = vpack.c.b16 %v407, %v406
    %v523 = vpack.c.b16 %v409, %v408
    %v524 = vpack.c.b16 %v411, %v410
    %v525 = vpack.c.b16 %v413, %v412
    %v526 = vpack.c.b16 %v415, %v414
    %v527 = vpack.c.b16 %v417, %v416
    %v528 = vpack.c.b16 %v419, %v418
    %v529 = vpack.c.b16 %v421, %v420
    %v530 = vpack.c.b16 %v423, %v422
    %v531 = vpack.c.b16 %v425, %v424
    %v532 = vpack.c.b16 %v427, %v426
    %v533 = vpack.c.b16 %v429, %v428
    %v534 = vpack.c.b16 %v431, %v430
    %v535 = vpack.c.b16 %v433, %v432
    %v536 = vpack.c.b16 %v435, %v434
    %v537 = vpack.c.b16 %v437, %v436
    %v538 = vpack.c.b16 %v439, %v438
    %v539 = vpack.c.b16 %v441, %v440
    %v540 = vpack.c.b16 %v443, %v442
    %v541 = vpack.c.b16 %v445, %v444
    %v542 = vpack.c.b16 %v447, %v446
    %v543 = vpack.c.b16 %v449, %v448
    %v544 = vpack.c.b16 %v451, %v450
    %v545 = vpack.c.b16 %v453, %v452
    %v546 = vpack.c.b16 %v455, %v454
    %v547 = vpack.c.b16 %v457, %v456
    %v548 = vpack.c.b16 %v459, %v458
    %v549 = vpack.c.b16 %v461, %v460
    %v550 = vpack.c.b16 %v463, %v462
    %v551 = vpack.c.b16 %v465, %v464
    %v552 = vpack.c.b16 %v467, %v466
    %v553 = vpack.c.b16 %v469, %v468
    %v554 = vpack.c.b16 %v471, %v470
    %v555 = vpack.c.b16 %v473, %v472
    %v556 = vpack.c.b16 %v475, %v474
    %v557 = vpack.c.b16 %v477, %v476
    %v558 = vpack.c.b16 %v479, %v478
    %v559 = vpack.c.b16 %v481, %v480
    %v560 = vpack.c.b16 %v483, %v482
    %v561 = vpack.c.b16 %v485, %v484
    %v562 = vpack.c.b16 %v487, %v486
    %v563 = vpack.c.b16 %v489, %v488
    %v564 = vpack.c.b16 %v491, %v490
    %v565 = vpack.c.b16 %v493, %v492
    %v566 = vpack.c.b16 %v495, %v494
    %v567 = vpack.c.b16 %v497, %v496
    %v568 = vpack.c.b16 %v499, %v498
    %v569 = vpack.c.b16 %v501, %v500
    %v570 = vpack.c.b16 %v503, %v502
    %v571 = vpack.c.b16 %v505, %v504
    %v572 = vpack.c.b16 %v507, %v506
    %v573 = vpack.c.b16 %v509, %v508
    %638 = vmatprep.subr.bf16.mxu0 0
    %639 = vmatpush1.bf16.msra.mxu0 %v517
    %640 = vmatprep.subr.bf16.mxu0 0
    %641 = vmatpush1.bf16.msra.mxu0 %v516
    %642 = vmatprep.subr.bf16.mxu0 0
    %643 = vmatpush1.bf16.msra.mxu0 %v515
    %644 = vmatprep.subr.bf16.mxu0 0
    %645 = vmatpush1.bf16.msra.mxu0 %v514
    %646 = vmatprep.subr.bf16.mxu0 0
    %647 = vmatpush1.bf16.msra.mxu0 %v513
    %648 = vmatprep.subr.bf16.mxu0 0
    %649 = vmatpush1.bf16.msra.mxu0 %v512
    %650 = vmatprep.subr.bf16.mxu0 0
    %651 = vmatpush1.bf16.msra.mxu0 %v511
    %652 = vmatprep.subr.bf16.mxu0 0
    %653 = vmatpush1.bf16.msra.mxu0 %v510
    %654 = vmatprep.subr.bf16.mxu0 0
    %655 = vmatpush2.bf16.msra.mxu0 %v525
    %656 = vmatprep.subr.bf16.mxu0 0
    %657 = vmatpush2.bf16.msra.mxu0 %v524
    %658 = vmatprep.subr.bf16.mxu0 0
    %659 = vmatpush2.bf16.msra.mxu0 %v523
    %660 = vmatprep.subr.bf16.mxu0 0
    %661 = vmatpush2.bf16.msra.mxu0 %v522
    %662 = vmatprep.subr.bf16.mxu0 0
    %663 = vmatpush2.bf16.msra.mxu0 %v521
    %664 = vmatprep.subr.bf16.mxu0 0
    %665 = vmatpush2.bf16.msra.mxu0 %v520
    %666 = vmatprep.subr.bf16.mxu0 0
    %667 = vmatpush2.bf16.msra.mxu0 %v519
    %668 = vmatprep.subr.bf16.mxu0 0
    %669 = vmatpush2.bf16.msra.mxu0 %v518
    %670 = vmatprep.mubr.bf16.mxu0 %v112
    %671 = vmatmul.mubr.bf16.gmra.mxu0 %v111
    %v672 = vpop.f32.mrf.mxu0
    %v673 = vadd.f32 %v252, %v672
    %v674 = vpop.f32.mrf.mxu0
    %v675 = vpop.f32.mrf.mxu0
    %v676 = vpop.f32.mrf.mxu0
    %677 = vdwg.mxu0
    %678 = vmatprep.subr.bf16.mxu0 0
    %679 = vmatpush1.bf16.msra.mxu0 %v533
    %680 = vmatprep.subr.bf16.mxu0 0
    %681 = vmatpush1.bf16.msra.mxu0 %v532
    %682 = vmatprep.subr.bf16.mxu0 0
    %683 = vmatpush1.bf16.msra.mxu0 %v531
    %684 = vmatprep.subr.bf16.mxu0 0
    %685 = vmatpush1.bf16.msra.mxu0 %v530
    %686 = vmatprep.subr.bf16.mxu0 0
    %687 = vmatpush1.bf16.msra.mxu0 %v529
    %688 = vmatprep.subr.bf16.mxu0 0
    %689 = vmatpush1.bf16.msra.mxu0 %v528
    %690 = vmatprep.subr.bf16.mxu0 0
    %691 = vmatpush1.bf16.msra.mxu0 %v527
    %692 = vmatprep.subr.bf16.mxu0 0
    %693 = vmatpush1.bf16.msra.mxu0 %v526
    %694 = vmatprep.subr.bf16.mxu0 0
    %695 = vmatpush2.bf16.msra.mxu0 %v541
    %696 = vmatprep.subr.bf16.mxu0 0
    %697 = vmatpush2.bf16.msra.mxu0 %v540
    %698 = vmatprep.subr.bf16.mxu0 0
    %699 = vmatpush2.bf16.msra.mxu0 %v539
    %700 = vmatprep.subr.bf16.mxu0 0
    %701 = vmatpush2.bf16.msra.mxu0 %v538
    %702 = vmatprep.subr.bf16.mxu0 0
    %703 = vmatpush2.bf16.msra.mxu0 %v537
    %704 = vmatprep.subr.bf16.mxu0 0
    %705 = vmatpush2.bf16.msra.mxu0 %v536
    %706 = vmatprep.subr.bf16.mxu0 0
    %707 = vmatpush2.bf16.msra.mxu0 %v535
    %708 = vmatprep.subr.bf16.mxu0 0
    %709 = vmatpush2.bf16.msra.mxu0 %v534
    %710 = vmatprep.mubr.bf16.mxu0 %v114
    %711 = vmatmul.mubr.bf16.gmra.mxu0 %v113
    %v712 = vpop.f32.mrf.mxu0
    %v713 = vadd.f32 %v673, %v712
    %v714 = vpop.f32.mrf.mxu0
    %v715 = vpop.f32.mrf.mxu0
    %v716 = vpop.f32.mrf.mxu0
    %717 = vdwg.mxu0
    %718 = vmatprep.subr.bf16.mxu0 0
    %719 = vmatpush1.bf16.msra.mxu0 %v549
    %720 = vmatprep.subr.bf16.mxu0 0
    %721 = vmatpush1.bf16.msra.mxu0 %v548
    %722 = vmatprep.subr.bf16.mxu0 0
    %723 = vmatpush1.bf16.msra.mxu0 %v547
    %724 = vmatprep.subr.bf16.mxu0 0
    %725 = vmatpush1.bf16.msra.mxu0 %v546
    %726 = vmatprep.subr.bf16.mxu0 0
    %727 = vmatpush1.bf16.msra.mxu0 %v545
    %728 = vmatprep.subr.bf16.mxu0 0
    %729 = vmatpush1.bf16.msra.mxu0 %v544
    %730 = vmatprep.subr.bf16.mxu0 0
    %731 = vmatpush1.bf16.msra.mxu0 %v543
    %732 = vmatprep.subr.bf16.mxu0 0
    %733 = vmatpush1.bf16.msra.mxu0 %v542
    %734 = vmatprep.subr.bf16.mxu0 0
    %735 = vmatpush2.bf16.msra.mxu0 %v557
    %736 = vmatprep.subr.bf16.mxu0 0
    %737 = vmatpush2.bf16.msra.mxu0 %v556
    %738 = vmatprep.subr.bf16.mxu0 0
    %739 = vmatpush2.bf16.msra.mxu0 %v555
    %740 = vmatprep.subr.bf16.mxu0 0
    %741 = vmatpush2.bf16.msra.mxu0 %v554
    %742 = vmatprep.subr.bf16.mxu0 0
    %743 = vmatpush2.bf16.msra.mxu0 %v553
    %744 = vmatprep.subr.bf16.mxu0 0
    %745 = vmatpush2.bf16.msra.mxu0 %v552
    %746 = vmatprep.subr.bf16.mxu0 0
    %747 = vmatpush2.bf16.msra.mxu0 %v551
    %748 = vmatprep.subr.bf16.mxu0 0
    %749 = vmatpush2.bf16.msra.mxu0 %v550
    %750 = vmatprep.mubr.bf16.mxu0 %v116
    %751 = vmatmul.mubr.bf16.gmra.mxu0 %v115
    %v752 = vpop.f32.mrf.mxu0
    %v753 = vadd.f32 %v713, %v752
    %v754 = vpop.f32.mrf.mxu0
    %v755 = vpop.f32.mrf.mxu0
    %v756 = vpop.f32.mrf.mxu0
    %757 = vdwg.mxu0
    %758 = vmatprep.subr.bf16.mxu0 0
    %759 = vmatpush1.bf16.msra.mxu0 %v565
    %760 = vmatprep.subr.bf16.mxu0 0
    %761 = vmatpush1.bf16.msra.mxu0 %v564
    %762 = vmatprep.subr.bf16.mxu0 0
    %763 = vmatpush1.bf16.msra.mxu0 %v563
    %764 = vmatprep.subr.bf16.mxu0 0
    %765 = vmatpush1.bf16.msra.mxu0 %v562
    %766 = vmatprep.subr.bf16.mxu0 0
    %767 = vmatpush1.bf16.msra.mxu0 %v561
    %768 = vmatprep.subr.bf16.mxu0 0
    %769 = vmatpush1.bf16.msra.mxu0 %v560
    %770 = vmatprep.subr.bf16.mxu0 0
    %771 = vmatpush1.bf16.msra.mxu0 %v559
    %772 = vmatprep.subr.bf16.mxu0 0
    %773 = vmatpush1.bf16.msra.mxu0 %v558
    %774 = vmatprep.subr.bf16.mxu0 0
    %775 = vmatpush2.bf16.msra.mxu0 %v573
    %776 = vmatprep.subr.bf16.mxu0 0
    %777 = vmatpush2.bf16.msra.mxu0 %v572
    %778 = vmatprep.subr.bf16.mxu0 0
    %779 = vmatpush2.bf16.msra.mxu0 %v571
    %780 = vmatprep.subr.bf16.mxu0 0
    %781 = vmatpush2.bf16.msra.mxu0 %v570
    %782 = vmatprep.subr.bf16.mxu0 0
    %783 = vmatpush2.bf16.msra.mxu0 %v569
    %784 = vmatprep.subr.bf16.mxu0 0
    %785 = vmatpush2.bf16.msra.mxu0 %v568
    %786 = vmatprep.subr.bf16.mxu0 0
    %787 = vmatpush2.bf16.msra.mxu0 %v567
    %788 = vmatprep.subr.bf16.mxu0 0
    %789 = vmatpush2.bf16.msra.mxu0 %v566
    %790 = vmatprep.mubr.bf16.mxu0 %v118
    %791 = vmatmul.mubr.bf16.gmra.mxu0 %v117
    %v792 = vpop.f32.mrf.mxu0
    %v793 = vadd.f32 %v753, %v792
    %v794 = vpop.f32.mrf.mxu0
    %v795 = vpop.f32.mrf.mxu0
    %v796 = vpop.f32.mrf.mxu0
    %797 = vdwg.mxu0
    %v798 = vmax.f32 %v793, 0.0
    %v799 = vpack.c.bf16 %v798, %v798
    %v800 = vld [vmem:[%s3] sm:$0xf]
    %v801 = vld [vmem:[%s3 + $0x4] sm:$0xf]
    %v802 = vld [vmem:[%s3 + $0x8] sm:$0xf]
    %v803 = vld [vmem:[%s3 + $0xc] sm:$0xf]
    %v804 = vld [vmem:[%s3 + $0x10] sm:$0xf]
    %v805 = vld [vmem:[%s3 + $0x14] sm:$0xf]
    %v806 = vld [vmem:[%s3 + $0x18] sm:$0xf]
    %v807 = vld [vmem:[%s3 + $0x1c] sm:$0xf]
    %v808 = vld [vmem:[%s3 + $0x20] sm:$0xf]
    %v809 = vld [vmem:[%s3 + $0x24] sm:$0xf]
    %v810 = vld [vmem:[%s3 + $0x28] sm:$0xf]
    %v811 = vld [vmem:[%s3 + $0x2c] sm:$0xf]
    %v812 = vld [vmem:[%s3 + $0x30] sm:$0xf]
    %v813 = vld [vmem:[%s3 + $0x34] sm:$0xf]
    %v814 = vld [vmem:[%s3 + $0x38] sm:$0xf]
    %v815 = vld [vmem:[%s3 + $0x3c] sm:$0xf]
    %v816 = vld [vmem:[%s4] sm:$0x1]
    %v818 = vlaneseq
    %v819 = vshrl.u32 %v818, 7
    %v820 = vsub.s32 0, %v819
    %v821 = vrot.slane %v816, %v820
    %v839 = vunpack.c.l.b16 %v800
    %v840 = vunpack.c.l.b16 %v801
    %v841 = vunpack.c.l.b16 %v802
    %v842 = vunpack.c.l.b16 %v803
    %v843 = vunpack.c.l.b16 %v804
    %v844 = vunpack.c.l.b16 %v805
    %v845 = vunpack.c.l.b16 %v806
    %v846 = vunpack.c.l.b16 %v807
    %v847 = vunpack.c.l.b16 %v808
    %v848 = vunpack.c.l.b16 %v809
    %v849 = vunpack.c.l.b16 %v810
    %v850 = vunpack.c.l.b16 %v811
    %v851 = vunpack.c.l.b16 %v812
    %v852 = vunpack.c.l.b16 %v813
    %v853 = vunpack.c.l.b16 %v814
    %v854 = vunpack.c.l.b16 %v815
    %v855 = vpack.c.b16 %v840, %v839
    %v856 = vpack.c.b16 %v842, %v841
    %v857 = vpack.c.b16 %v844, %v843
    %v858 = vpack.c.b16 %v846, %v845
    %v859 = vpack.c.b16 %v848, %v847
    %v860 = vpack.c.b16 %v850, %v849
    %v861 = vpack.c.b16 %v852, %v851
    %v862 = vpack.c.b16 %v854, %v853
    %871 = vmatprep.subr.bf16.mxu0 0
    %872 = vmatpush1.bf16.msra.mxu0 %v862
    %873 = vmatprep.subr.bf16.mxu0 0
    %874 = vmatpush1.bf16.msra.mxu0 %v861
    %875 = vmatprep.subr.bf16.mxu0 0
    %876 = vmatpush1.bf16.msra.mxu0 %v860
    %877 = vmatprep.subr.bf16.mxu0 0
    %878 = vmatpush1.bf16.msra.mxu0 %v859
    %879 = vmatprep.subr.bf16.mxu0 0
    %880 = vmatpush1.bf16.msra.mxu0 %v858
    %881 = vmatprep.subr.bf16.mxu0 0
    %882 = vmatpush1.bf16.msra.mxu0 %v857
    %883 = vmatprep.subr.bf16.mxu0 0
    %884 = vmatpush1.bf16.msra.mxu0 %v856
    %885 = vmatprep.subr.bf16.mxu0 0
    %886 = vmatpush1.bf16.msra.mxu0 %v855
    %887 = vmatprep.subr.bf16.mxu0 0
    %888 = vmatpush2.bf16.msra.mxu0 0
    %889 = vmatprep.subr.bf16.mxu0 0
    %890 = vmatpush2.bf16.msra.mxu0 0
    %891 = vmatprep.subr.bf16.mxu0 0
    %892 = vmatpush2.bf16.msra.mxu0 0
    %893 = vmatprep.subr.bf16.mxu0 0
    %894 = vmatpush2.bf16.msra.mxu0 0
    %895 = vmatprep.subr.bf16.mxu0 0
    %896 = vmatpush2.bf16.msra.mxu0 0
    %897 = vmatprep.subr.bf16.mxu0 0
    %898 = vmatpush2.bf16.msra.mxu0 0
    %899 = vmatprep.subr.bf16.mxu0 0
    %900 = vmatpush2.bf16.msra.mxu0 0
    %901 = vmatprep.subr.bf16.mxu0 0
    %902 = vmatpush2.bf16.msra.mxu0 0
    %903 = vmatprep.mubr.bf16.mxu0 0
    %904 = vmatmul.mubr.bf16.gmra.mxu0 %v799
    %v905 = vpop.f32.mrf.mxu0
    %v906 = vadd.f32 %v821, %v905
    %v907 = vpop.f32.mrf.mxu0
    %v908 = vpop.f32.mrf.mxu0
    %v909 = vpop.f32.mrf.mxu0
    %910 = vdwg.mxu0
    %v911 = vxor.u32 %v906, 2147483648
    %v912 = vmul.f32 %v911, 1.442695
    %v913 = vpow.pop %v912
    %v914 = vadd.f32 %v913, 1.0
    %v915 = vrcp.pop %v914
    %v916 = vmul.f32 1.0, %v915
    %vm917 = vcmask 17408
    %918 = vst.msk [vmem:[#allocation5] sm:$0x3] %vm917, %v916
    // Predicated region
    $region26: #{lane_exist_forward.1} parent=1 // pred_check
      _
    $region27: #{lane_exist_forward.1} parent=1 // pred_check_branch
      %920 = sbr.rel (0) target = $region29
    $region28: #{lane_exist_forward.1} parent=1 // pred_region
      %s922 = ssub.s32 32, 32
      %923 = vsyncadd [#allocation4], %s922
      %s925 = sshll.u32 [#allocation5], 4
      %s926 = int_to_ptr.vmem [resolvable:$true] %s925
      %928 = dma.vmem_to_hbm [thread:$0]  %s926, 32, %s5, [#allocation4]
    $region29: #{lane_exist_forward.1} parent=1 // pred_fallthru
      _
    // Predicated region
    $region30: #{lane_exist_forward.1} parent=1 // pred_check
      _
    $region31: #{lane_exist_forward.1} parent=1 // pred_check_branch
      %930 = sbr.rel (0) target = $region33
    $region32: #{lane_exist_forward.1} parent=1 // pred_region
      %931 = dma.done [#allocation4], 32
    $region33: #{lane_exist_forward.1} parent=1 // pred_fallthru
      _
    %932 = vsyncpa [#allocation3], 1
    %933 = vsyncpa [#allocation4], 1

</llo_original>
